<compile_context>
chip_gen: v6e
topology: v6e:2x2x1
jax: 0.10.0
libtpu: 0.0.40
codegen_flags: <defaults>
</compile_context>

<pallas_src>
import jax
import jax.numpy as jnp
from jax.experimental import pallas as pl
from jax.experimental.pallas import tpu as pltpu

LANE = 128


def _round_up(x, m):
    return ((x + m - 1) // m) * m


def mlp_kernel(x_ref, w1t_ref, w2t_ref, b2_ref, o_ref):
    # Cast x -> bf16 on the VPU (hidden under the DMA/MXU); avoids a separate
    # wrapper-side cast that would round-trip x through HBM.
    x = x_ref[...].astype(jnp.bfloat16)

    # Hidden layer (bias=False): h = x @ W1^T, f32 accumulation on the MXU.
    h = jnp.dot(x, w1t_ref[...], preferred_element_type=jnp.float32)

    # Output layer: logits = h @ W2^T + b2.  W2^T is zero-padded to 128 class
    # lanes; the padded bias lanes hold -1e30 so they vanish in the softmax.
    logits = jnp.dot(h.astype(jnp.bfloat16), w2t_ref[...],
                     preferred_element_type=jnp.float32) + b2_ref[...]

    # Numerically-stable softmax over the (padded) class axis, all in f32.
    # Exact divide: the kernel is memory-bound, so the VALU divide is free and
    # rows sum to 1 to f32 precision.
    m = jnp.max(logits, axis=-1, keepdims=True)
    e = jnp.exp(logits - m)
    s = jnp.sum(e, axis=-1, keepdims=True)
    o_ref[...] = (e / s).astype(o_ref.dtype)


def prepare_params(w1, w2, b2):
    """One-time parameter prep (do at init, NOT per forward call).

    w1: [hid, fea], w2: [cls, hid], b2: [cls]  (PyTorch Linear layouts).
    Returns:
      w1t : [fea, hid]    bf16
      w2tp: [hid, cls_p]  bf16, zero-padded to cls_p = round_up(cls, 128)
      b2p : [1,  cls_p]   f32, padded lanes = -1e30 (excluded from softmax)
      cls : original class count (for the output slice)
    """
    w1 = jnp.asarray(w1)
    w2 = jnp.asarray(w2)
    b2 = jnp.asarray(b2)
    cls, hid = w2.shape
    cls_p = _round_up(cls, LANE)

    w1t = w1.T.astype(jnp.bfloat16)                                   # [fea, hid]
    w2tp = jnp.zeros((hid, cls_p), jnp.bfloat16).at[:, :cls].set(
        w2.T.astype(jnp.bfloat16))                                    # [hid, cls_p]
    b2p = jnp.full((1, cls_p), -1e30, jnp.float32).at[0, :cls].set(
        b2.astype(jnp.float32))                                       # [1, cls_p]
    return w1t, w2tp, b2p, cls


def _vmem_budget():
    """Generation-aware VMEM tile budget + scoped-VMEM limit (bytes)."""
    try:
        cap = int(pltpu.get_tpu_info().vmem_capacity_bytes)
    except Exception:
        cap = 64 << 20  # conservative: assume v7x-sized VMEM
    budget = int(cap * 0.35)   # what the tile picker may plan against
    limit = int(cap * 0.55)    # scoped-VMEM limit handed to the compiler
    return budget, limit


def _pick_tile_n(n, fea, hid, cls_p, budget_bytes):
    """Pick a batch tile that (a) fits the lane-padded, double-buffered VMEM
    footprint and (b) leaves >= ~8 grid steps at large N so the BlockSpec
    pipeline overlaps DMA with compute and both v7x TensorCores get work."""
    fea_p = _round_up(fea, LANE)
    hid_p = _round_up(hid, LANE)

    # Resident weights (bf16, sublane/lane padded) + f32 bias row.
    weights = (_round_up(fea, 16) * hid_p + _round_up(hid, 16) * cls_p) * 2 + cls_p * 4
    # Per-row VMEM bytes, lane-padded:
    #   x tile f32 x2 buffers, out tile f32 x2 buffers,
    #   bf16 cast of x, h (f32 + bf16 cast), logits + e (f32).
    per_row = (2 * fea_p * 4          # x tile, double-buffered, f32
               + 2 * cls_p * 4        # out tile, double-buffered, f32
               + fea_p * 2            # bf16 cast of x
               + hid_p * 4 + hid_p * 2  # h f32 + bf16 cast of h
               + 2 * cls_p * 4)       # logits + e
    max_rows = max(16, (budget_bytes - weights) // per_row)

    MIN_STEPS = 8     # keep the pipeline busy / shard across v7x's 2 TCs
    PREF_TILE = 1024  # >=512-row tiles sit on the HBM-roofline plateau
    tile = min(max_rows, PREF_TILE, max(16, pl.cdiv(n, MIN_STEPS)))
    tile = min(tile, n)
    # bf16 packs two rows per sublane -> align tiles to 16 rows when possible.
    if tile >= 16:
        tile = (tile // 16) * 16
    elif tile >= 8:
        tile = 8
    return max(1, tile)


def mlp_forward(x, w1t, w2tp, b2p, cls):
    """x: [N, fea] (f32); w1t/w2tp/b2p/cls from prepare_params(). Returns [N, cls]."""
    n, fea = x.shape
    fea_w, hid = w1t.shape
    hid_w, cls_p = w2tp.shape
    assert fea_w == fea and hid_w == hid and b2p.shape == (1, cls_p)
    assert cls <= cls_p

    out_dtype = x.dtype
    budget, vmem_limit = _vmem_budget()
    tile_n = _pick_tile_n(n, fea, hid, cls_p, budget)
    grid = (pl.cdiv(n, tile_n),)

    cost = pl.CostEstimate(
        flops=2 * n * fea * hid + 2 * n * hid * cls_p,
        transcendentals=n * cls_p,
        bytes_accessed=(n * fea * x.dtype.itemsize     # x read (f32)
                        + fea * hid * 2                # w1t (bf16)
                        + hid * cls_p * 2              # w2t padded (bf16)
                        + cls_p * 4                    # bias
                        + n * cls_p * 4),              # lane-dense output write
    )

    out_padded = pl.pallas_call(
        mlp_kernel,
        out_shape=jax.ShapeDtypeStruct((n, cls_p), out_dtype),
        grid=grid,
        in_specs=[
            # x: batch-tiled, double-buffered across grid steps (f32, cast in-kernel).
            pl.BlockSpec((tile_n, fea), lambda i: (i, 0)),
            # Weights/bias: constant index_map -> VMEM-resident across the grid.
            pl.BlockSpec((fea, hid), lambda i: (0, 0)),
            pl.BlockSpec((hid, cls_p), lambda i: (0, 0)),
            pl.BlockSpec((1, cls_p), lambda i: (0, 0)),
        ],
        # Lane-dense (128-wide) output block -> unmasked vst stores.
        out_specs=pl.BlockSpec((tile_n, cls_p), lambda i: (i, 0)),
        compiler_params=pltpu.CompilerParams(
            dimension_semantics=("parallel",),   # megacore batch sharding on v7x
            vmem_limit_bytes=vmem_limit,
        ),
        cost_estimate=cost,
    )(x, w1t, w2tp, b2p)

    # Drop the padded class lanes (they hold ~0 probability mass).  Consumers
    # that tolerate a padded [N, 128] slab can skip this slice.
    return out_padded[:, :cls]


if __name__ == "__main__":
    # Small shapes consistent with the module's forward: [N, fea] -> [N, cls].
    batch, fea_dim, hid_dim, cls_dim = 8, 32, 32, 16

    key = jax.random.PRNGKey(0)
    kx, kw1, kw2, kb2 = jax.random.split(key, 4)

    x = jax.random.normal(kx, (batch, fea_dim), dtype=jnp.float32)
    # PyTorch Linear weight shapes: [out_features, in_features].
    w1 = jax.random.normal(kw1, (hid_dim, fea_dim), dtype=jnp.float32) * 0.1  # linear (bias=False)
    w2 = jax.random.normal(kw2, (cls_dim, hid_dim), dtype=jnp.float32) * 0.1  # linear2 weight
    b2 = jax.random.normal(kb2, (cls_dim,), dtype=jnp.float32) * 0.1          # linear2 bias

    # One-time parameter prep (transpose, bf16 cast, class-axis padding).
    w1t, w2tp, b2p, cls = prepare_params(w1, w2, b2)

    out = mlp_forward(x, w1t, w2tp, b2p, cls)
    jax.block_until_ready(out)

    # Reference check in plain JAX f32 (dropout p=0.0 is identity).
    ref = jax.nn.softmax((x @ w1.T) @ w2.T + b2, axis=1)
    assert out.shape == (batch, cls_dim)
    # Looser tolerance: bf16 MXU operands inside the kernel.
    assert jnp.allclose(out, ref, atol=2e-2, rtol=2e-2), float(jnp.max(jnp.abs(out - ref)))
    # Exact divide in the kernel -> rows sum to 1 to f32 precision.
    assert jnp.allclose(jnp.sum(out, axis=1), 1.0, atol=1e-3)

    print("KERNEL_OK")
</pallas_src>

<mosaic_0001>
module attributes {stable_mosaic.version = 11 : i64} {
  func.func @mlp_kernel(%arg0: i32, %arg1: memref<8x32xf32, #tpu.memory_space<vmem>>, %arg2: memref<32x32xbf16, #tpu.memory_space<vmem>>, %arg3: memref<32x128xbf16, #tpu.memory_space<vmem>>, %arg4: memref<1x128xf32, #tpu.memory_space<vmem>>, %arg5: memref<8x128xf32, #tpu.memory_space<vmem>>) attributes {dimension_semantics = [#tpu.dimension_semantics<parallel>], iteration_bounds = array<i64: 1>, scalar_prefetch = 0 : i64, scratch_operands = 0 : i64, tpu.core_type = #tpu.core_type<tc>, window_params = [{transform_indices = @transform_0, window_bounds = array<i64: 8, 32>}, {pipeline_mode = #tpu.pipeline_mode<synchronous>, transform_indices = @transform_1, window_bounds = array<i64: 32, 32>}, {pipeline_mode = #tpu.pipeline_mode<synchronous>, transform_indices = @transform_2, window_bounds = array<i64: 32, 128>}, {pipeline_mode = #tpu.pipeline_mode<synchronous>, transform_indices = @transform_3, window_bounds = array<i64: 1, 128>}, {transform_indices = @transform_4, window_bounds = array<i64: 8, 128>}]} {
    %c0 = arith.constant 0 : index
    %c0_0 = arith.constant 0 : index
    %0 = vector.load %arg1[%c0, %c0_0] : memref<8x32xf32, #tpu.memory_space<vmem>>, vector<8x32xf32>
    %1 = arith.truncf %0 : vector<8x32xf32> to vector<8x32xbf16>
    %c0_1 = arith.constant 0 : index
    %c0_2 = arith.constant 0 : index
    %2 = vector.load %arg2[%c0_1, %c0_2] : memref<32x32xbf16, #tpu.memory_space<vmem>>, vector<32x32xbf16>
    %cst = arith.constant dense<0.000000e+00> : vector<8x32xf32>
    %3 = tpu.matmul %1, %2, %cst {dimension_numbers = #tpu.dot_dimension_numbers<[1], [0], [0], [1], [0, 0, 1, 1], [], []>} : vector<8x32xbf16>, vector<32x32xbf16>, vector<8x32xf32> -> vector<8x32xf32>
    %4 = arith.truncf %3 : vector<8x32xf32> to vector<8x32xbf16>
    %c0_3 = arith.constant 0 : index
    %c0_4 = arith.constant 0 : index
    %5 = vector.load %arg3[%c0_3, %c0_4] : memref<32x128xbf16, #tpu.memory_space<vmem>>, vector<32x128xbf16>
    %cst_5 = arith.constant dense<0.000000e+00> : vector<8x128xf32>
    %6 = tpu.matmul %4, %5, %cst_5 {dimension_numbers = #tpu.dot_dimension_numbers<[1], [0], [0], [1], [0, 0, 1, 1], [], []>} : vector<8x32xbf16>, vector<32x128xbf16>, vector<8x128xf32> -> vector<8x128xf32>
    %c0_6 = arith.constant 0 : index
    %c0_7 = arith.constant 0 : index
    %7 = vector.load %arg4[%c0_6, %c0_7] : memref<1x128xf32, #tpu.memory_space<vmem>>, vector<1x128xf32>
    %8 = vector.broadcast %7 : vector<1x128xf32> to vector<8x128xf32>
    %9 = arith.addf %6, %8 : vector<8x128xf32>
    %cst_8 = arith.constant dense<0xFF800000> : vector<8xf32>
    %10 = vector.multi_reduction <maximumf>, %9, %cst_8 [1] : vector<8x128xf32> to vector<8xf32>
    %11 = vector.shape_cast %10 : vector<8xf32> to vector<8x1xf32>
    %12 = vector.broadcast %11 : vector<8x1xf32> to vector<8x128xf32>
    %13 = arith.subf %9, %12 : vector<8x128xf32>
    %14 = math.exp %13 : vector<8x128xf32>
    %cst_9 = arith.constant dense<0.000000e+00> : vector<8xf32>
    %15 = vector.multi_reduction <add>, %14, %cst_9 [1] : vector<8x128xf32> to vector<8xf32>
    %16 = vector.shape_cast %15 : vector<8xf32> to vector<8x1xf32>
    %17 = vector.broadcast %16 : vector<8x1xf32> to vector<8x128xf32>
    %18 = arith.divf %14, %17 : vector<8x128xf32>
    %c0_10 = arith.constant 0 : index
    %c0_11 = arith.constant 0 : index
    %19 = vector.load %arg5[%c0_10, %c0_11] : memref<8x128xf32, #tpu.memory_space<vmem>>, vector<8x128xf32>
    tpu.vector_store %arg5[%c0_10, %c0_11], %18 {strides = array<i32>} : memref<8x128xf32, #tpu.memory_space<vmem>>, vector<8x128xf32>,
    return
  }
  func.func @transform_0(%arg0: i32) -> (i32, i32) {
    %c0_i32 = arith.constant 0 : i32
    %c0_i32_0 = arith.constant 0 : i32
    return %arg0, %c0_i32 : i32, i32
  }
  func.func @transform_1(%arg0: i32) -> (i32, i32) {
    %c0_i32 = arith.constant 0 : i32
    %c0_i32_0 = arith.constant 0 : i32
    %c0_i32_1 = arith.constant 0 : i32
    return %c0_i32, %c0_i32_0 : i32, i32
  }
  func.func @transform_2(%arg0: i32) -> (i32, i32) {
    %c0_i32 = arith.constant 0 : i32
    %c0_i32_0 = arith.constant 0 : i32
    %c0_i32_1 = arith.constant 0 : i32
    return %c0_i32, %c0_i32_0 : i32, i32
  }
  func.func @transform_3(%arg0: i32) -> (i32, i32) {
    %c0_i32 = arith.constant 0 : i32
    %c0_i32_0 = arith.constant 0 : i32
    %c0_i32_1 = arith.constant 0 : i32
    return %c0_i32, %c0_i32_0 : i32, i32
  }
  func.func @transform_4(%arg0: i32) -> (i32, i32) {
    %c0_i32 = arith.constant 0 : i32
    %c0_i32_0 = arith.constant 0 : i32
    return %arg0, %c0_i32 : i32, i32
  }
}

</mosaic_0001>

<llo_original>
// kernel: tpu_custom_call.1
$region0: #{tpu_custom_call.1}
  #allocation0 [shape = 'u32[]', space=smem, size = 0x4, offset = 0x4, fixed_abs, tag = 'smem constant byte address 0x4 - core index']
  #allocation1 [shape = 'u32[144,128]{1,0:T(1,128)}', space=vmem, size = 0x12000, scoped, tag = 'internal scratch']
  %s0 = inlined_call_operand.hbm [shape: f32[8,32], index: 0, kind: input, shape index: {}]
  %s1 = inlined_call_operand.hbm [shape: bf16[32,32], index: 1, kind: input, shape index: {}]
  %s2 = inlined_call_operand.hbm [shape: bf16[32,128], index: 2, kind: input, shape index: {}]
  %s3 = inlined_call_operand.vmem [shape: f32[1,128], index: 3, kind: input, shape index: {}]
  %s4 = inlined_call_operand.hbm [shape: f32[8,128], index: 4, kind: output, shape index: {}]
  %s5 = sld [smem:[#allocation0]]
  $region38: #{tpu_custom_call.1} parent=0
    _
  %s7 = ssub.s32 1, %s5
  %s8 = scalar_select 0, %s7, %s5
  $region1: #{tpu_custom_call.1} parent=0
    #allocation2 [shape = 'u8[4096]{0}', space=vmem, size = 0x1000, scoped, tag = 'input window, operand 0, single buffered']
    #allocation3 [shape = 's32[1]{0}', space=sflag, size = 0x4, scoped, tag = 'scoped memory for tpu_custom_call.1']
    #allocation4 [shape = 's32[1]{0}', space=sflag, size = 0x4, scoped, tag = 'scoped memory for tpu_custom_call.1']
    #allocation5 [shape = 'u8[8192]{0}', space=vmem, size = 0x2000, scoped, tag = 'input window, operand 1, single buffered']
    #allocation6 [shape = 's32[1]{0}', space=sflag, size = 0x4, scoped, tag = 'scoped memory for tpu_custom_call.1']
    #allocation7 [shape = 'u8[8192]{0}', space=vmem, size = 0x2000, scoped, tag = 'input window, operand 2, single buffered']
    #allocation8 [shape = 'u8[4096]{0}', space=vmem, size = 0x1000, scoped, tag = 'output window, operand 0, single buffered']
    %9 = vsyncpa [#allocation3], 0
    %10 = vsyncpa [#allocation6], 0
    %11 = vsyncpa [#allocation4], 0
    // Predicated region
    $region2: #{tpu_custom_call.1} parent=1 // pred_check
      _
    $region3: #{tpu_custom_call.1} parent=1 // pred_check_branch
      %13 = sbr.rel (0) target = $region5
    $region4: #{tpu_custom_call.1} parent=1 // pred_region
      %s15 = ssub.s32 128, 128
      %16 = vsyncadd [#allocation3], %s15
      %s18 = sshll.u32 [#allocation2], 4
      %s19 = int_to_ptr.vmem [resolvable:$true] %s18
      %21 = dma.hbm_to_vmem [thread:$0]  %s0, 128, %s19, [#allocation3]
    $region5: #{tpu_custom_call.1} parent=1 // pred_fallthru
      _
    // Predicated region
    $region6: #{tpu_custom_call.1} parent=1 // pred_check
      _
    $region7: #{tpu_custom_call.1} parent=1 // pred_check_branch
      %23 = sbr.rel (0) target = $region9
    $region8: #{tpu_custom_call.1} parent=1 // pred_region
      %s25 = ssub.s32 256, 256
      %26 = vsyncadd [#allocation6], %s25
      %s27 = sshll.u32 [#allocation5], 4
      %s28 = int_to_ptr.vmem [resolvable:$true] %s27
      %33 = dma.hbm_to_vmem [thread:$0]  %s1, 256, %s28, [#allocation6], 64, 64, 4
    $region9: #{tpu_custom_call.1} parent=1 // pred_fallthru
      _
    // Predicated region
    $region10: #{tpu_custom_call.1} parent=1 // pred_check
      _
    $region11: #{tpu_custom_call.1} parent=1 // pred_check_branch
      %35 = sbr.rel (0) target = $region13
    $region12: #{tpu_custom_call.1} parent=1 // pred_region
      %s37 = ssub.s32 256, 256
      %38 = vsyncadd [#allocation6], %s37
      %s39 = sshll.u32 [#allocation7], 4
      %s40 = int_to_ptr.vmem [resolvable:$true] %s39
      %45 = dma.hbm_to_vmem [thread:$0]  %s2, 256, %s40, [#allocation6], 64, 64, 4
    $region13: #{tpu_custom_call.1} parent=1 // pred_fallthru
      _
    // Predicated region
    $region14: #{tpu_custom_call.1} parent=1 // pred_check
      _
    $region15: #{tpu_custom_call.1} parent=1 // pred_check_branch
      %47 = sbr.rel (0) target = $region17
    $region16: #{tpu_custom_call.1} parent=1 // pred_region
      _
    $region17: #{tpu_custom_call.1} parent=1 // pred_fallthru
      _
    // Predicated region
    $region18: #{tpu_custom_call.1} parent=1 // pred_check
      _
    $region19: #{tpu_custom_call.1} parent=1 // pred_check_branch
      %49 = sbr.rel (0) target = $region21
    $region20: #{tpu_custom_call.1} parent=1 // pred_region
      %50 = dma.done [#allocation3], 128
    $region21: #{tpu_custom_call.1} parent=1 // pred_fallthru
      _
    // Predicated region
    $region22: #{tpu_custom_call.1} parent=1 // pred_check
      _
    $region23: #{tpu_custom_call.1} parent=1 // pred_check_branch
      %52 = sbr.rel (0) target = $region25
    $region24: #{tpu_custom_call.1} parent=1 // pred_region
      %53 = dma.done [#allocation6], 256
    $region25: #{tpu_custom_call.1} parent=1 // pred_fallthru
      _
    // Predicated region
    $region26: #{tpu_custom_call.1} parent=1 // pred_check
      _
    $region27: #{tpu_custom_call.1} parent=1 // pred_check_branch
      %55 = sbr.rel (0) target = $region29
    $region28: #{tpu_custom_call.1} parent=1 // pred_region
      %56 = dma.done [#allocation6], 256
    $region29: #{tpu_custom_call.1} parent=1 // pred_fallthru
      _
    %v58 = vld [vmem:[#allocation2] sm:$0xff]
    %v59 = vpack.c.bf16 %v58, %v58
    %v60 = vld [vmem:[#allocation5] sm:$0xf]
    %v61 = vld [vmem:[#allocation5 + $0x4] sm:$0xf]
    %v62 = vld [vmem:[#allocation5 + $0x8] sm:$0xf]
    %v63 = vld [vmem:[#allocation5 + $0xc] sm:$0xf]
    %v68 = vunpack.c.l.b16 %v60
    %v69 = vunpack.c.l.b16 %v61
    %v70 = vunpack.c.l.b16 %v62
    %v71 = vunpack.c.l.b16 %v63
    %v72 = vpack.c.b16 %v69, %v68
    %v73 = vpack.c.b16 %v71, %v70
    %vm76 = vcmask 261120
    %v78 = vsel %vm76, %v59, 0
    %80 = vmatprep.subr.bf16.mxu0 0
    %81 = vmatpush1.bf16.msra.mxu0 0
    %82 = vmatprep.subr.bf16.mxu0 0
    %83 = vmatpush1.bf16.msra.mxu0 0
    %84 = vmatprep.subr.bf16.mxu0 0
    %85 = vmatpush1.bf16.msra.mxu0 0
    %86 = vmatprep.subr.bf16.mxu0 0
    %87 = vmatpush1.bf16.msra.mxu0 0
    %88 = vmatprep.subr.bf16.mxu0 0
    %89 = vmatpush1.bf16.msra.mxu0 0
    %90 = vmatprep.subr.bf16.mxu0 0
    %91 = vmatpush1.bf16.msra.mxu0 0
    %92 = vmatprep.subr.bf16.mxu0 0
    %93 = vmatpush1.bf16.msra.mxu0 %v73
    %94 = vmatprep.subr.bf16.mxu0 0
    %95 = vmatpush1.bf16.msra.mxu0 %v72
    %96 = vmatprep.subr.bf16.mxu0 0
    %97 = vmatpush2.bf16.msra.mxu0 0
    %98 = vmatprep.subr.bf16.mxu0 0
    %99 = vmatpush2.bf16.msra.mxu0 0
    %100 = vmatprep.subr.bf16.mxu0 0
    %101 = vmatpush2.bf16.msra.mxu0 0
    %102 = vmatprep.subr.bf16.mxu0 0
    %103 = vmatpush2.bf16.msra.mxu0 0
    %104 = vmatprep.subr.bf16.mxu0 0
    %105 = vmatpush2.bf16.msra.mxu0 0
    %106 = vmatprep.subr.bf16.mxu0 0
    %107 = vmatpush2.bf16.msra.mxu0 0
    %108 = vmatprep.subr.bf16.mxu0 0
    %109 = vmatpush2.bf16.msra.mxu0 0
    %110 = vmatprep.subr.bf16.mxu0 0
    %111 = vmatpush2.bf16.msra.mxu0 0
    %112 = vmatprep.mubr.bf16.mxu0 0
    %113 = vmatmul.mubr.bf16.gmra.mxu0 %v78
    %v114 = vpop.f32.mrf.mxu0
    %v115 = vadd.f32 0.0, %v114
    %v116 = vpop.f32.mrf.mxu0
    %v117 = vpop.f32.mrf.mxu0
    %v118 = vpop.f32.mrf.mxu0
    %119 = vdwg.mxu0
    %v120 = vpack.c.bf16 %v115, %v115
    %v121 = vld [vmem:[#allocation7] sm:$0xf]
    %v122 = vld [vmem:[#allocation7 + $0x4] sm:$0xf]
    %v123 = vld [vmem:[#allocation7 + $0x8] sm:$0xf]
    %v124 = vld [vmem:[#allocation7 + $0xc] sm:$0xf]
    %v125 = vld [vmem:[%s3] sm:$0x1]
    %v127 = vlaneseq
    %v128 = vshrl.u32 %v127, 7
    %v129 = vsub.s32 0, %v128
    %v130 = vrot.slane %v125, %v129
    %v136 = vunpack.c.l.b16 %v121
    %v137 = vunpack.c.l.b16 %v122
    %v138 = vunpack.c.l.b16 %v123
    %v139 = vunpack.c.l.b16 %v124
    %v140 = vpack.c.b16 %v137, %v136
    %v141 = vpack.c.b16 %v139, %v138
    %v145 = vsel %vm76, %v120, 0
    %147 = vmatprep.subr.bf16.mxu0 0
    %148 = vmatpush1.bf16.msra.mxu0 0
    %149 = vmatprep.subr.bf16.mxu0 0
    %150 = vmatpush1.bf16.msra.mxu0 0
    %151 = vmatprep.subr.bf16.mxu0 0
    %152 = vmatpush1.bf16.msra.mxu0 0
    %153 = vmatprep.subr.bf16.mxu0 0
    %154 = vmatpush1.bf16.msra.mxu0 0
    %155 = vmatprep.subr.bf16.mxu0 0
    %156 = vmatpush1.bf16.msra.mxu0 0
    %157 = vmatprep.subr.bf16.mxu0 0
    %158 = vmatpush1.bf16.msra.mxu0 0
    %159 = vmatprep.subr.bf16.mxu0 0
    %160 = vmatpush1.bf16.msra.mxu0 %v141
    %161 = vmatprep.subr.bf16.mxu0 0
    %162 = vmatpush1.bf16.msra.mxu0 %v140
    %163 = vmatprep.subr.bf16.mxu0 0
    %164 = vmatpush2.bf16.msra.mxu0 0
    %165 = vmatprep.subr.bf16.mxu0 0
    %166 = vmatpush2.bf16.msra.mxu0 0
    %167 = vmatprep.subr.bf16.mxu0 0
    %168 = vmatpush2.bf16.msra.mxu0 0
    %169 = vmatprep.subr.bf16.mxu0 0
    %170 = vmatpush2.bf16.msra.mxu0 0
    %171 = vmatprep.subr.bf16.mxu0 0
    %172 = vmatpush2.bf16.msra.mxu0 0
    %173 = vmatprep.subr.bf16.mxu0 0
    %174 = vmatpush2.bf16.msra.mxu0 0
    %175 = vmatprep.subr.bf16.mxu0 0
    %176 = vmatpush2.bf16.msra.mxu0 0
    %177 = vmatprep.subr.bf16.mxu0 0
    %178 = vmatpush2.bf16.msra.mxu0 0
    %179 = vmatprep.mubr.bf16.mxu0 0
    %180 = vmatmul.mubr.bf16.gmra.mxu0 %v145
    %v181 = vpop.f32.mrf.mxu0
    %v182 = vadd.f32 %v130, %v181
    %v183 = vpop.f32.mrf.mxu0
    %v184 = vpop.f32.mrf.mxu0
    %v185 = vpop.f32.mrf.mxu0
    %186 = vdwg.mxu0
    %187 = vmax.xlane.f32.xlu0 %v182
    %v188 = vpop.xlane.xlu0 %187
    %v189 = vsub.f32 %v182, %v188
    %v190 = vmul.f32 %v189, 1.442695
    %v191 = vpow.pop %v190
    %192 = vadd.xlane.f32.xlu0 %v191
    %v193 = vpop.xlane.xlu0 %192
    %v194 = vrcp.pop %v193
    %v195 = vmul.f32 %v191, %v194
    %196 = vst [vmem:[#allocation8] sm:$0xff] %v195
    // Predicated region
    $region30: #{tpu_custom_call.1} parent=1 // pred_check
      _
    $region31: #{tpu_custom_call.1} parent=1 // pred_check_branch
      %198 = sbr.rel (0) target = $region33
    $region32: #{tpu_custom_call.1} parent=1 // pred_region
      %s200 = ssub.s32 128, 128
      %201 = vsyncadd [#allocation4], %s200
      %s203 = sshll.u32 [#allocation8], 4
      %s204 = int_to_ptr.vmem [resolvable:$true] %s203
      %206 = dma.vmem_to_hbm [thread:$0]  %s204, 128, %s4, [#allocation4]
    $region33: #{tpu_custom_call.1} parent=1 // pred_fallthru
      _
    // Predicated region
    $region34: #{tpu_custom_call.1} parent=1 // pred_check
      _
    $region35: #{tpu_custom_call.1} parent=1 // pred_check_branch
      %208 = sbr.rel (0) target = $region37
    $region36: #{tpu_custom_call.1} parent=1 // pred_region
      %209 = dma.done [#allocation4], 128
    $region37: #{tpu_custom_call.1} parent=1 // pred_fallthru
      _
    %210 = vsyncpa [#allocation3], 1
    %211 = vsyncpa [#allocation6], 1
    %212 = vsyncpa [#allocation4], 1

</llo_original>
